<compile_context>
chip_gen: v7x
topology: tpu7x:2x2x1
jax: 0.10.0
libtpu: 0.0.40
codegen_flags: <defaults>
</compile_context>

<pallas_src>
import functools

import jax
import jax.numpy as jnp
from jax.experimental import pallas as pl
from jax.experimental.pallas import tpu as pltpu


def _physical_vmem_bytes() -> int:
    """Per-core VMEM capacity; conservative fallback if the query fails."""
    try:
        info = pltpu.get_tpu_info()
        vmem = getattr(info, "vmem_capacity_bytes", None)
        if vmem:
            return int(vmem)
    except Exception:
        pass
    return 64 * 1024 * 1024  # v7x-sized (smallest current generation)


def _round_up(x: int, m: int) -> int:
    return ((x + m - 1) // m) * m


def _choose_tile_rows(rows: int, d_model: int, itemsize: int):
    """Pick a row tile so ~4 pipelined buffers (2x in, 2x out) fit in ~half of
    physical VMEM (headroom for params / f32 intermediates), keeping the grid
    at >= 2 steps where the problem allows (v7x shards rows across 2 cores)."""
    budget = _physical_vmem_bytes() // 2
    per_elem = max(itemsize, 4)  # kernel math is f32
    bytes_per_row = max(d_model * per_elem, 1)
    max_tm = budget // (4 * bytes_per_row)
    tm = max(8, (min(max_tm, 1024) // 8) * 8)

    rows8 = _round_up(max(rows, 1), 8)
    tm = min(tm, rows8)
    tm = max(8, (tm // 8) * 8)
    # Keep at least 2 grid steps when possible (v7x: 2 TensorCores per chip).
    while tm > 8 and pl.cdiv(rows8, tm) < 2:
        tm = max(8, (tm // 2 // 8) * 8)
    return tm, budget


def _layernorm_kernel(x_ref, gamma_ref, beta_ref, o_ref, *, eps: float):
    # x_ref: (tm, D), gamma_ref/beta_ref: (1, D), o_ref: (tm, D)
    x = x_ref[...]
    if x.dtype != jnp.float32:
        x = x.astype(jnp.float32)
    d = x.shape[-1]

    # Fused single pass: sum(x) and sum(x*x) feed both the mean and the
    # unbiased variance (torch.std default divides by N-1).
    s1 = jnp.sum(x, axis=-1, keepdims=True)
    s2 = jnp.sum(x * x, axis=-1, keepdims=True)
    mean = s1 * jnp.float32(1.0 / d)
    var = (s2 - jnp.float32(d) * mean * mean) / jnp.float32(d - 1)
    var = jnp.maximum(var, 0.0)  # clamp rounding-induced negatives
    std = jnp.sqrt(var)

    # NOTE: torch module normalizes by (std + eps), NOT sqrt(var + eps).
    # EUP approximate reciprocal keeps the divide off the VPU issue slots;
    # one reciprocal per row, broadcast-multiplied across D.
    inv = pl.reciprocal(std + jnp.float32(eps), approx=True)

    gamma = gamma_ref[...]
    beta = beta_ref[...]
    if gamma.dtype != jnp.float32:
        gamma = gamma.astype(jnp.float32)
    if beta.dtype != jnp.float32:
        beta = beta.astype(jnp.float32)

    out = (x - mean) * inv
    o_ref[...] = (gamma * out + beta).astype(o_ref.dtype)


def layer_norm(x, gamma, beta, eps=1e-12, block_rows=None):
    """Applies torch-style LayerNorm over the last axis of x."""
    orig_shape = x.shape
    d_model = orig_shape[-1]
    rows = 1
    for s in orig_shape[:-1]:
        rows *= s

    # For best store-side throughput d_model should be a multiple of 128
    # (lane-dense output). Small d_model still works but underfills vregs.
    # TODO(synk): fold groups of rows into the lane axis when d_model < 128.

    x2 = x.reshape(rows, d_model)
    gamma2 = gamma.reshape(1, d_model)
    beta2 = beta.reshape(1, d_model)

    itemsize = jnp.dtype(x.dtype).itemsize
    if block_rows is None:
        tm, vmem_budget = _choose_tile_rows(rows, d_model, itemsize)
    else:
        tm = max(8, (int(block_rows) // 8) * 8)
        vmem_budget = _physical_vmem_bytes() // 2

    # Ragged grid: no host-side padding copies. Pallas pads edge reads and
    # drops out-of-bounds writes of the last partial tile; rows are
    # independent so padded garbage rows cannot corrupt valid output.
    grid = (pl.cdiv(rows, tm),)

    kernel = functools.partial(_layernorm_kernel, eps=float(eps))

    out2 = pl.pallas_call(
        kernel,
        out_shape=jax.ShapeDtypeStruct((rows, d_model), x.dtype),
        grid_spec=pltpu.PrefetchScalarGridSpec(
            num_scalar_prefetch=0,
            grid=grid,
            in_specs=[
                pl.BlockSpec((tm, d_model), lambda i: (i, 0)),
                # gamma/beta: constant block index -> stay resident in VMEM.
                pl.BlockSpec((1, d_model), lambda i: (0, 0)),
                pl.BlockSpec((1, d_model), lambda i: (0, 0)),
            ],
            out_specs=pl.BlockSpec((tm, d_model), lambda i: (i, 0)),
        ),
        compiler_params=pltpu.CompilerParams(
            dimension_semantics=("parallel",),
            vmem_limit_bytes=int(vmem_budget),
        ),
    )(x2, gamma2, beta2)

    return out2.reshape(orig_shape)


if __name__ == "__main__":
    # small shapes consistent with a (batch, seq, d_model) transformer input
    batch, seq, d_model = 2, 8, 32
    key = jax.random.PRNGKey(0)
    x = jax.random.normal(key, (batch, seq, d_model), dtype=jnp.float32)

    # deterministic parameter init matching nn.Parameter(torch.ones/zeros)
    gamma = jnp.ones((d_model,), dtype=jnp.float32)
    beta = jnp.zeros((d_model,), dtype=jnp.float32)

    out = layer_norm(x, gamma, beta, eps=1e-12)
    out = jax.block_until_ready(out)

    # pure-JAX reference with the same (torch-module) semantics:
    # unbiased std (N-1) and division by (std + eps)
    mean = jnp.mean(x, axis=-1, keepdims=True)
    std = jnp.sqrt(
        jnp.sum((x - mean) ** 2, axis=-1, keepdims=True) / (d_model - 1)
    )
    ref = gamma * ((x - mean) / (std + 1e-12)) + beta

    # slightly looser tolerance than exact divide because of the EUP
    # approximate reciprocal
    assert jnp.allclose(out, ref, atol=5e-3, rtol=5e-3), float(
        jnp.max(jnp.abs(out - ref))
    )

    print("KERNEL_OK")
</pallas_src>

<mosaic_0001>
module attributes {stable_mosaic.version = 11 : i64} {
  func.func @_layernorm_kernel(%arg0: i32, %arg1: memref<8x32xf32, #tpu.memory_space<vmem>>, %arg2: memref<1x32xf32, #tpu.memory_space<vmem>>, %arg3: memref<1x32xf32, #tpu.memory_space<vmem>>, %arg4: memref<8x32xf32, #tpu.memory_space<vmem>>) attributes {dimension_semantics = [#tpu.dimension_semantics<parallel>], iteration_bounds = array<i64: 2>, scalar_prefetch = 0 : i64, scratch_operands = 0 : i64, tpu.core_type = #tpu.core_type<tc>, window_params = [{transform_indices = @transform_0, window_bounds = array<i64: 8, 32>}, {pipeline_mode = #tpu.pipeline_mode<synchronous>, transform_indices = @transform_1, window_bounds = array<i64: 1, 32>}, {pipeline_mode = #tpu.pipeline_mode<synchronous>, transform_indices = @transform_2, window_bounds = array<i64: 1, 32>}, {transform_indices = @transform_3, window_bounds = array<i64: 8, 32>}]} {
    %c0 = arith.constant 0 : index
    %c0_0 = arith.constant 0 : index
    %0 = vector.load %arg1[%c0, %c0_0] : memref<8x32xf32, #tpu.memory_space<vmem>>, vector<8x32xf32>
    %cst = arith.constant dense<0.000000e+00> : vector<8xf32>
    %1 = vector.multi_reduction <add>, %0, %cst [1] : vector<8x32xf32> to vector<8xf32>
    %2 = vector.shape_cast %1 : vector<8xf32> to vector<8x1xf32>
    %3 = arith.mulf %0, %0 : vector<8x32xf32>
    %cst_1 = arith.constant dense<0.000000e+00> : vector<8xf32>
    %4 = vector.multi_reduction <add>, %3, %cst_1 [1] : vector<8x32xf32> to vector<8xf32>
    %5 = vector.shape_cast %4 : vector<8xf32> to vector<8x1xf32>
    %cst_2 = arith.constant 3.125000e-02 : f32
    %6 = vector.broadcast %cst_2 : f32 to vector<8x1xf32>
    %7 = arith.mulf %2, %6 : vector<8x1xf32>
    %cst_3 = arith.constant 3.200000e+01 : f32
    %8 = vector.broadcast %cst_3 : f32 to vector<8x1xf32>
    %9 = arith.mulf %8, %7 : vector<8x1xf32>
    %10 = arith.mulf %9, %7 : vector<8x1xf32>
    %11 = arith.subf %5, %10 : vector<8x1xf32>
    %cst_4 = arith.constant 3.100000e+01 : f32
    %12 = vector.broadcast %cst_4 : f32 to vector<8x1xf32>
    %13 = arith.divf %11, %12 : vector<8x1xf32>
    %cst_5 = arith.constant 0.000000e+00 : f32
    %14 = vector.broadcast %cst_5 : f32 to vector<8x1xf32>
    %15 = arith.maximumf %13, %14 : vector<8x1xf32>
    %16 = math.sqrt %15 : vector<8x1xf32>
    %cst_6 = arith.constant 9.99999996E-13 : f32
    %17 = vector.broadcast %cst_6 : f32 to vector<8x1xf32>
    %18 = arith.addf %16, %17 : vector<8x1xf32>
    %19 = tpu.reciprocal %18 {approx = true} : vector<8x1xf32> -> vector<8x1xf32>
    %c0_7 = arith.constant 0 : index
    %c0_8 = arith.constant 0 : index
    %20 = vector.load %arg2[%c0_7, %c0_8] : memref<1x32xf32, #tpu.memory_space<vmem>>, vector<1x32xf32>
    %c0_9 = arith.constant 0 : index
    %c0_10 = arith.constant 0 : index
    %21 = vector.load %arg3[%c0_9, %c0_10] : memref<1x32xf32, #tpu.memory_space<vmem>>, vector<1x32xf32>
    %22 = vector.broadcast %7 : vector<8x1xf32> to vector<8x32xf32>
    %23 = arith.subf %0, %22 : vector<8x32xf32>
    %24 = vector.broadcast %19 : vector<8x1xf32> to vector<8x32xf32>
    %25 = arith.mulf %23, %24 : vector<8x32xf32>
    %26 = vector.broadcast %20 : vector<1x32xf32> to vector<8x32xf32>
    %27 = arith.mulf %26, %25 : vector<8x32xf32>
    %28 = vector.broadcast %21 : vector<1x32xf32> to vector<8x32xf32>
    %29 = arith.addf %27, %28 : vector<8x32xf32>
    %c0_11 = arith.constant 0 : index
    %c0_12 = arith.constant 0 : index
    %30 = vector.load %arg4[%c0_11, %c0_12] : memref<8x32xf32, #tpu.memory_space<vmem>>, vector<8x32xf32>
    tpu.vector_store %arg4[%c0_11, %c0_12], %29 {strides = array<i32>} : memref<8x32xf32, #tpu.memory_space<vmem>>, vector<8x32xf32>,
    return
  }
  func.func @transform_0(%arg0: i32) -> (i32, i32) {
    %c0_i32 = arith.constant 0 : i32
    %c0_i32_0 = arith.constant 0 : i32
    return %arg0, %c0_i32 : i32, i32
  }
  func.func @transform_1(%arg0: i32) -> (i32, i32) {
    %c0_i32 = arith.constant 0 : i32
    %c0_i32_0 = arith.constant 0 : i32
    %c0_i32_1 = arith.constant 0 : i32
    return %c0_i32, %c0_i32_0 : i32, i32
  }
  func.func @transform_2(%arg0: i32) -> (i32, i32) {
    %c0_i32 = arith.constant 0 : i32
    %c0_i32_0 = arith.constant 0 : i32
    %c0_i32_1 = arith.constant 0 : i32
    return %c0_i32, %c0_i32_0 : i32, i32
  }
  func.func @transform_3(%arg0: i32) -> (i32, i32) {
    %c0_i32 = arith.constant 0 : i32
    %c0_i32_0 = arith.constant 0 : i32
    return %arg0, %c0_i32 : i32, i32
  }
}

</mosaic_0001>

<llo_original>
// kernel: tpu_custom_call.1
$region0: #{tpu_custom_call.1}
  #allocation0 [shape = 'u32[]', space=smem, size = 0x4, offset = 0x4, fixed_abs, tag = 'smem constant byte address 0x4 - core index']
  #allocation1 [shape = 'u32[144,128]{1,0:T(1,128)}', space=vmem, size = 0x12000, scoped, tag = 'internal scratch']
  %s0 = inlined_call_operand.hbm [shape: f32[16,32], index: 0, kind: input, shape index: {}]
  %s1 = inlined_call_operand.vmem [shape: f32[1,32], index: 1, kind: input, shape index: {}]
  %s2 = inlined_call_operand.vmem [shape: f32[1,32], index: 2, kind: input, shape index: {}]
  %s3 = inlined_call_operand.hbm [shape: f32[16,32], index: 3, kind: output, shape index: {}]
  %s4 = sld [smem:[#allocation0]]
  $region49: #{tpu_custom_call.1} parent=0
    _
  %s6 = ssub.s32 1, %s4
  %s7 = scalar_select 0, %s6, %s4
  $region1: #{tpu_custom_call.1} parent=0
    #allocation2 [shape = 'u8[8192]{0}', space=vmem, size = 0x2000, scoped, tag = 'input window, operand 0']
    #allocation3 [shape = 's32[2]{0}', space=sflag, size = 0x8, scoped, tag = 'scoped memory for tpu_custom_call.1']
    #allocation4 [shape = 's32[2]{0}', space=sflag, size = 0x8, scoped, tag = 'scoped memory for tpu_custom_call.1']
    #allocation5 [shape = 'u8[8192]{0}', space=vmem, size = 0x2000, scoped, tag = 'output window, operand 0']
    %8 = vsyncpa [#allocation3], 0
    %s9 = scalar_lea.sflag [#allocation3], 1
    %10 = vsyncpa %s9, 0
    %11 = vsyncpa [#allocation4], 0
    %s12 = scalar_lea.sflag [#allocation4], 1
    %13 = vsyncpa %s12, 0
    loop: start=0, step=1, limit=4
    $region2: #{tpu_custom_call.1} parent=1 // loop_pre_header
      _
    $region3: #{tpu_custom_call.1} parent=1 // loop_header
      %s15 = sphi 0, %s19
      %p16 = scmp.ge.s32.totalorder %s15, 4
      %s25 = sphi 0, %s27
      %s28 = sphi 0, %s25
      %s29 = sphi 0, %s28
      %s45 = sphi 0, %s29
      %s49 = sphi 0, %s49
      %s51 = sphi 0, %s49
      %s52 = sphi 0, %s51
      %s66 = sphi 0, %s52
      %s70 = sphi 0, %s70
      %s72 = sphi 0, %s70
      %s73 = sphi 0, %s72
      %s87 = sphi 0, %s73
      %s93 = sphi 0, %s95
      %s96 = sphi 0, %s93
      %s97 = sphi 0, %s96
      %s113 = sphi 0, %s97
    $region4: #{tpu_custom_call.1} parent=1 // loop_header_branch
      %18 = sbr.rel (%p16) target = $region8
    $region5: #{tpu_custom_call.1} parent=1 // loop_body
      %s20 = ssub.s32 %s15, 1
      %s21 = ssub.s32 %s15, 2
      %s22 = sadd.s32 %s15, 1
      %s23 = ssub.s32 %s15, %s22
      %p24 = scmp.eq.s32.totalorder %s23, 0
      %s26 = sadd.s32 %s25, 1
      %s27 = scalar_select %p24, %s25, %s26
      %p30 = pneg %p24
      %p31 = scmp.eq.s32.totalorder %s15, 1
      %p32 = por %p30, %p31
      %p33 = scmp.ne.s32.totalorder %s25, %s28
      %p34 = scmp.eq.s32.totalorder %s15, 0
      %p35 = por %p33, %p34
      %p36 = scmp.ne.s32.totalorder %s25, %s28
      %p37 = scmp.eq.s32.totalorder %s20, 1
      %p38 = por %p36, %p37
      %p39 = scmp.ne.s32.totalorder %s28, %s29
      %p40 = scmp.eq.s32.totalorder %s20, 0
      %p41 = por %p39, %p40
      %p42 = scmp.ne.s32.totalorder %s28, %s29
      %p43 = scmp.eq.s32.totalorder %s21, 1
      %p44 = por %p42, %p43
      %p46 = scmp.ne.s32.totalorder %s29, %s45
      %p47 = scmp.eq.s32.totalorder %s21, 0
      %p48 = por %p46, %p47
      %s50 = sadd.s32 %s49, 1
      %p53 = scmp.eq.s32.totalorder %s15, 1
      %p54 = scmp.ne.s32.totalorder %s49, %s51
      %p55 = scmp.eq.s32.totalorder %s15, 0
      %p56 = por %p54, %p55
      %p57 = scmp.ne.s32.totalorder %s49, %s51
      %p58 = scmp.eq.s32.totalorder %s20, 1
      %p59 = por %p57, %p58
      %p60 = scmp.ne.s32.totalorder %s51, %s52
      %p61 = scmp.eq.s32.totalorder %s20, 0
      %p62 = por %p60, %p61
      %p63 = scmp.ne.s32.totalorder %s51, %s52
      %p64 = scmp.eq.s32.totalorder %s21, 1
      %p65 = por %p63, %p64
      %p67 = scmp.ne.s32.totalorder %s52, %s66
      %p68 = scmp.eq.s32.totalorder %s21, 0
      %p69 = por %p67, %p68
      %s71 = sadd.s32 %s70, 1
      %p74 = scmp.eq.s32.totalorder %s15, 1
      %p75 = scmp.ne.s32.totalorder %s70, %s72
      %p76 = scmp.eq.s32.totalorder %s15, 0
      %p77 = por %p75, %p76
      %p78 = scmp.ne.s32.totalorder %s70, %s72
      %p79 = scmp.eq.s32.totalorder %s20, 1
      %p80 = por %p78, %p79
      %p81 = scmp.ne.s32.totalorder %s72, %s73
      %p82 = scmp.eq.s32.totalorder %s20, 0
      %p83 = por %p81, %p82
      %p84 = scmp.ne.s32.totalorder %s72, %s73
      %p85 = scmp.eq.s32.totalorder %s21, 1
      %p86 = por %p84, %p85
      %p88 = scmp.ne.s32.totalorder %s73, %s87
      %p89 = scmp.eq.s32.totalorder %s21, 0
      %p90 = por %p88, %p89
      %s91 = ssub.s32 %s15, %s22
      %p92 = scmp.eq.s32.totalorder %s91, 0
      %s94 = sadd.s32 %s93, 1
      %s95 = scalar_select %p92, %s93, %s94
      %p98 = pneg %p92
      %p99 = scmp.eq.s32.totalorder %s15, 1
      %p100 = por %p98, %p99
      %p101 = scmp.ne.s32.totalorder %s93, %s96
      %p102 = scmp.eq.s32.totalorder %s15, 0
      %p103 = por %p101, %p102
      %p104 = scmp.ne.s32.totalorder %s93, %s96
      %p105 = scmp.eq.s32.totalorder %s20, 1
      %p106 = por %p104, %p105
      %p107 = scmp.ne.s32.totalorder %s96, %s97
      %p108 = scmp.eq.s32.totalorder %s20, 0
      %p109 = por %p107, %p108
      %p110 = scmp.ne.s32.totalorder %s96, %s97
      %p111 = scmp.eq.s32.totalorder %s21, 1
      %p112 = por %p110, %p111
      %p114 = scmp.ne.s32.totalorder %s97, %s113
      %p115 = scmp.eq.s32.totalorder %s21, 0
      %p116 = por %p114, %p115
      %p117 = scmp.le.s32.totalorder 1, %s15
      %p118 = scmp.lt.s32.totalorder %s15, 3
      %p119 = pnand %p117, %p118
      %p120 = pneg %p119
      // Predicated region
      $region9: #{tpu_custom_call.1} parent=5 // pred_check
        _
      $region10: #{tpu_custom_call.1} parent=5 // pred_check_branch
        %122 = sbr.rel (%p119) target = $region12
      $region11: #{tpu_custom_call.1} parent=5 // pred_region
        %s123 = ssub.s32 %s15, 1
        // Predicated region
        $region13: #{tpu_custom_call.1} parent=11 // pred_check
          %p124 = pneg %p62
        $region14: #{tpu_custom_call.1} parent=11 // pred_check_branch
          %126 = sbr.rel (%p124) target = $region16
        $region15: #{tpu_custom_call.1} parent=11 // pred_region
          _
        $region16: #{tpu_custom_call.1} parent=11 // pred_fallthru
          _
        // Predicated region
        $region17: #{tpu_custom_call.1} parent=11 // pred_check
          %p127 = pneg %p83
        $region18: #{tpu_custom_call.1} parent=11 // pred_check_branch
          %129 = sbr.rel (%p127) target = $region20
        $region19: #{tpu_custom_call.1} parent=11 // pred_region
          _
        $region20: #{tpu_custom_call.1} parent=11 // pred_fallthru
          _
      $region12: #{tpu_custom_call.1} parent=5 // pred_fallthru
        _
      %p130 = scmp.lt.s32.totalorder %s15, 2
      // Predicated region
      $region21: #{tpu_custom_call.1} parent=5 // pred_check
        %p131 = pneg %p130
      $region22: #{tpu_custom_call.1} parent=5 // pred_check_branch
        %133 = sbr.rel (%p131) target = $region24
      $region23: #{tpu_custom_call.1} parent=5 // pred_region
        // Predicated region
        $region25: #{tpu_custom_call.1} parent=23 // pred_check
          %p134 = pneg %p35
        $region26: #{tpu_custom_call.1} parent=23 // pred_check_branch
          %136 = sbr.rel (%p134) target = $region28
        $region27: #{tpu_custom_call.1} parent=23 // pred_region
          %s137 = sand.u32 %s25, 1
          %s138 = scalar_lea.sflag [#allocation3], %s137
          %s139 = sand.u32 %s25, 1
          %s140 = smul.addr %s139, 8
          %s141 = scalar_lea.vmem [#allocation2], %s140
          %s143 = ssub.s32 128, 128
          %144 = vsyncadd %s138, %s143
          %s145 = smul.addr %s15, 128
          %s146 = scalar_lea.hbm %s0, %s145
          %s148 = sshll.u32 %s141, 4
          %s149 = int_to_ptr.vmem [resolvable:$true] %s148
          %151 = dma.hbm_to_vmem [thread:$0]  %s146, 128, %s149, %s138
        $region28: #{tpu_custom_call.1} parent=23 // pred_fallthru
          _
      $region24: #{tpu_custom_call.1} parent=5 // pred_fallthru
        _
      %p152 = scmp.le.s32.totalorder 1, %s15
      %p153 = scmp.lt.s32.totalorder %s15, 3
      %p154 = pnand %p152, %p153
      %p155 = pneg %p154
      // Predicated region
      $region29: #{tpu_custom_call.1} parent=5 // pred_check
        _
      $region30: #{tpu_custom_call.1} parent=5 // pred_check_branch
        %157 = sbr.rel (%p154) target = $region32
      $region31: #{tpu_custom_call.1} parent=5 // pred_region
        %s158 = ssub.s32 %s15, 1
        %s159 = sand.u32 %s28, 1
        %s160 = scalar_lea.sflag [#allocation3], %s159
        %s161 = sand.u32 %s28, 1
        %s162 = smul.addr %s161, 8
        %s163 = scalar_lea.vmem [#allocation2], %s162
        // Predicated region
        $region33: #{tpu_custom_call.1} parent=31 // pred_check
          %p164 = pneg %p41
        $region34: #{tpu_custom_call.1} parent=31 // pred_check_branch
          %166 = sbr.rel (%p164) target = $region36
        $region35: #{tpu_custom_call.1} parent=31 // pred_region
          %167 = dma.done %s160, 128
        $region36: #{tpu_custom_call.1} parent=31 // pred_fallthru
          _
        %s168 = sand.u32 %s28, 1
        %s169 = scalar_lea.sflag [#allocation3], %s168
        %s170 = sand.u32 %s28, 1
        %s171 = smul.addr %s170, 8
        %s172 = scalar_lea.vmem [#allocation2], %s171
        %p173 = pneg %p41
        %p174 = pneg %p38
        %p175 = pneg %p62
        %p176 = pneg %p59
        %p177 = pneg %p83
        %p178 = pneg %p80
        %p179 = pneg %p109
        %p180 = pneg %p106
        %s181 = sand.u32 %s96, 1
        %s182 = scalar_lea.sflag [#allocation4], %s181
        %s183 = sand.u32 %s96, 1
        %s184 = smul.addr %s183, 8
        %s185 = scalar_lea.vmem [#allocation5], %s184
        %v186 = vld [vmem:[%s163] sm:$0xff]
        %vm187 = vcmask 261120
        %v188 = vsel %vm187, %v186, 0.0
        %189 = vadd.xlane.f32.xlu0 %v188
        %v190 = vpop.xlane.xlu0 %189
        %v191 = vmul.f32 %v186, %v186
        %v192 = vsel %vm187, %v191, 0.0
        %193 = vadd.xlane.f32.xlu0 %v192
        %v194 = vpop.xlane.xlu0 %193
        %v195 = vmul.f32 %v190, 0.03125
        %v196 = vmul.f32 %v195, 32.0
        %v197 = vmul.f32 %v196, %v195
        %v198 = vsub.f32 %v194, %v197
        %v199 = vrcp.pop 31.0
        %v200 = vmul.f32 %v198, %v199
        %v201 = vmax.f32 %v200, 0.0
        %v202 = vrsqrt.pop %v201
        %v203 = vmul.f32 %v201, %v202
        %vm204 = vcmp.eq.f32.partialorder %v201, inf
        %v205 = vsel %vm204, %v201, %v203
        %vm206 = vcmp.eq.f32.partialorder %v201, 0.0
        %v207 = vand.u32 %v201, 2147483648
        %v208 = vsel %vm206, %v207, %v205
        %v209 = vadd.f32 %v208, 1e-12
        %v210 = vrcp.pop %v209
        %v211 = vld [vmem:[%s1] sm:$0x1]
        %v212 = vld [vmem:[%s2] sm:$0x1]
        %v213 = vsub.f32 %v186, %v195
        %v214 = vmul.f32 %v213, %v210
        %v216 = vlaneseq
        %v217 = vshrl.u32 %v216, 7
        %v218 = vsub.s32 0, %v217
        %v219 = vrot.slane %v211, %v218
        %v221 = vmul.f32 %v219, %v214
        %v223 = vlaneseq
        %v224 = vshrl.u32 %v223, 7
        %v225 = vsub.s32 0, %v224
        %v226 = vrot.slane %v212, %v225
        %v228 = vadd.f32 %v221, %v226
        %229 = vst.msk [vmem:[%s185] sm:$0xff] %vm187, %v228
        %s230 = sand.u32 %s96, 1
        %s231 = scalar_lea.sflag [#allocation4], %s230
        %s232 = sand.u32 %s96, 1
        %s233 = smul.addr %s232, 8
        %s234 = scalar_lea.vmem [#allocation5], %s233
        // Predicated region
        $region37: #{tpu_custom_call.1} parent=31 // pred_check
          %p235 = pneg %p106
        $region38: #{tpu_custom_call.1} parent=31 // pred_check_branch
          %237 = sbr.rel (%p235) target = $region40
        $region39: #{tpu_custom_call.1} parent=31 // pred_region
          %s239 = ssub.s32 128, 128
          %240 = vsyncadd %s231, %s239
          %s241 = smul.addr %s20, 128
          %s242 = scalar_lea.hbm %s3, %s241
          %s244 = sshll.u32 %s234, 4
          %s245 = int_to_ptr.vmem [resolvable:$true] %s244
          %247 = dma.vmem_to_hbm [thread:$0]  %s245, 128, %s242, %s231
        $region40: #{tpu_custom_call.1} parent=31 // pred_fallthru
          _
      $region32: #{tpu_custom_call.1} parent=5 // pred_fallthru
        _
      %p248 = scmp.le.s32.totalorder 2, %s15
      // Predicated region
      $region41: #{tpu_custom_call.1} parent=5 // pred_check
        %p249 = pneg %p248
      $region42: #{tpu_custom_call.1} parent=5 // pred_check_branch
        %251 = sbr.rel (%p249) target = $region44
      $region43: #{tpu_custom_call.1} parent=5 // pred_region
        %s252 = ssub.s32 %s15, 2
        // Predicated region
        $region45: #{tpu_custom_call.1} parent=43 // pred_check
          %p253 = pneg %p112
        $region46: #{tpu_custom_call.1} parent=43 // pred_check_branch
          %255 = sbr.rel (%p253) target = $region48
        $region47: #{tpu_custom_call.1} parent=43 // pred_region
          %s256 = sand.u32 %s97, 1
          %s257 = scalar_lea.sflag [#allocation4], %s256
          %s258 = sand.u32 %s97, 1
          %s259 = smul.addr %s258, 8
          %s260 = scalar_lea.vmem [#allocation5], %s259
          %261 = dma.done %s257, 128
        $region48: #{tpu_custom_call.1} parent=43 // pred_fallthru
          _
      $region44: #{tpu_custom_call.1} parent=5 // pred_fallthru
        _
    $region6: #{tpu_custom_call.1} parent=1 // loop_footer
      %s19 = sadd.s32 1, %s15
    $region7: #{tpu_custom_call.1} parent=1 // loop_footer_branch
      %14 = sbr.rel target = $region3
    $region8: #{tpu_custom_call.1} parent=1 // loop_exit
      _
    %262 = vsyncpa [#allocation3], 1
    %s263 = scalar_lea.sflag [#allocation3], 1
    %264 = vsyncpa %s263, 1
    %265 = vsyncpa [#allocation4], 1
    %s266 = scalar_lea.sflag [#allocation4], 1
    %267 = vsyncpa %s266, 1

</llo_original>
